<compile_context>
chip_gen: v7x
topology: tpu7x:2x2x1
jax: 0.10.0
libtpu: 0.0.40
codegen_flags: <defaults>
</compile_context>

<pallas_src>
import jax
import jax.numpy as jnp
from jax.experimental import pallas as pl
from jax.experimental.pallas import tpu as pltpu


def _round_up(x, m):
    return (x + m - 1) // m * m


def _quantize_weight(w, bits, scale, zero_point):
    """Replicates CustomQuantizedLinear._quantize_tensor (plain-JAX setup glue)."""
    qmin, qmax = 0, (1 << bits) - 1
    q = jnp.round(w / scale + zero_point)
    q = jnp.clip(q, qmin, qmax)
    return q.astype(jnp.uint8 if bits <= 8 else jnp.int16)


def _quant_linear_kernel(scale_ref, xhi_ref, xlo_ref, wqt_ref, corr_ref, b_ref, o_ref):
    """Grid = (M tiles, N tiles, K tiles); K is the innermost reduction axis.

    scale_ref : SMEM f32[1]          = [scale_factor]
    xhi_ref   : VMEM bf16[tm, tk]    high half of x (bf16x2 split)
    xlo_ref   : VMEM bf16[tm, tk]    low  half of x (bf16x2 split)
    wqt_ref   : VMEM u8  [tk, tn]    weight pre-transposed to (K, N)
    corr_ref  : VMEM f32 [tm, 1]     per-row  -scale*zp*rowsum(x)  (hoisted)
    b_ref     : VMEM f32 [1,  tn]    bias
    o_ref     : VMEM f32 [tm, tn]    output block, resident across k (accumulator)
    """
    k = pl.program_id(2)

    @pl.when(k == 0)
    def _init():
        o_ref[...] = jnp.zeros_like(o_ref)

    # Weight stays 1 byte/elem through HBM/VMEM; cast per-tile to bf16 (exact for
    # integers 0..255) to feed the MXU natively. bf16x2 x gives two bf16 passes.
    w = wqt_ref[...].astype(jnp.bfloat16)                           # (tk, tn)
    o_ref[...] += (jnp.dot(xhi_ref[...], w, preferred_element_type=jnp.float32)
                   + jnp.dot(xlo_ref[...], w, preferred_element_type=jnp.float32))

    @pl.when(k == pl.num_programs(2) - 1)
    def _finalize():
        # y = scale * (x @ Wq^T) - scale*zp*rowsum(x) + bias
        o_ref[...] = scale_ref[0] * o_ref[...] + corr_ref[...] + b_ref[...]


def prepare_quantized_linear(wq, bias, *, tm=128, tn=512, tk=1024):
    """One-time layout prep ("module init"): (N,K) u8 weight -> padded (K,N) u8,
    bias -> padded (1, Np). Do NOT call this per forward pass."""
    assert wq.dtype == jnp.uint8, "kernel layout/traffic assumptions are uint8 (bits <= 8)"
    N, K = wq.shape
    # Clamp tiles to the padded problem; keep last-two dims (8,128)-aligned and
    # the output / bias tiles lane-dense.
    tn = min(tn, _round_up(N, 128))
    tk = min(tk, _round_up(K, 128))
    np_, kp = _round_up(N, tn), _round_up(K, tk)
    wq_kn = jnp.pad(wq.T, ((0, kp - K), (0, np_ - N)))              # (Kp, Np) uint8
    bias_row = jnp.pad(bias.astype(jnp.float32), (0, np_ - N)).reshape(1, np_)
    return dict(wq_kn=wq_kn, bias_row=bias_row, N=N, K=K, tm=tm, tn=tn, tk=tk)


def quantized_linear(x, prepared, scale_factor, zero_point):
    """x: (B, K) f32 -> (B, N) f32, using a prepared weight layout."""
    N, K = prepared["N"], prepared["K"]
    wq_kn, bias_row = prepared["wq_kn"], prepared["bias_row"]
    tn, tk = prepared["tn"], prepared["tk"]
    kp, np_ = wq_kn.shape

    B, K2 = x.shape
    assert K2 == K, "weight / input feature mismatch"

    tm = min(prepared["tm"], _round_up(B, 8))
    mp = _round_up(B, tm)

    # bf16x2 split of x (hi + lo reconstructs x to ~f32 accuracy).
    x_f32 = x.astype(jnp.float32)
    x_hi = x_f32.astype(jnp.bfloat16)
    x_lo = (x_f32 - x_hi.astype(jnp.float32)).astype(jnp.bfloat16)

    scale = jnp.float32(scale_factor)
    zp = jnp.float32(zero_point)
    # Hoisted zero-point correction: rowsum of the *reconstructed* bf16x2 value so
    # the zp term cancels the matmul's zp content almost exactly.
    xsum = jnp.sum(x_hi.astype(jnp.float32) + x_lo.astype(jnp.float32),
                   axis=1, keepdims=True)                           # (B, 1)
    corr = (-scale * zp) * xsum                                     # (B, 1)

    x_hi_p = jnp.pad(x_hi, ((0, mp - B), (0, kp - K)))
    x_lo_p = jnp.pad(x_lo, ((0, mp - B), (0, kp - K)))
    corr_p = jnp.pad(corr, ((0, mp - B), (0, 0)))
    params = jnp.reshape(scale, (1,))

    grid = (mp // tm, np_ // tn, kp // tk)

    out = pl.pallas_call(
        _quant_linear_kernel,
        out_shape=jax.ShapeDtypeStruct((mp, np_), jnp.float32),
        grid_spec=pltpu.PrefetchScalarGridSpec(
            num_scalar_prefetch=0,
            grid=grid,
            in_specs=[
                pl.BlockSpec(memory_space=pltpu.SMEM),              # [scale]
                pl.BlockSpec((tm, tk), lambda i, j, k: (i, k)),     # x hi tile (bf16)
                pl.BlockSpec((tm, tk), lambda i, j, k: (i, k)),     # x lo tile (bf16)
                pl.BlockSpec((tk, tn), lambda i, j, k: (k, j)),     # uint8 weight tile (K, N)
                pl.BlockSpec((tm, 1), lambda i, j, k: (i, 0)),      # per-row correction
                pl.BlockSpec((1, tn), lambda i, j, k: (0, j)),      # bias tile
            ],
            out_specs=pl.BlockSpec((tm, tn), lambda i, j, k: (i, j)),
        ),
        compiler_params=pltpu.CompilerParams(
            dimension_semantics=("parallel", "parallel", "arbitrary")),
    )(params, x_hi_p, x_lo_p, wq_kn, corr_p, bias_row)

    return out[:B, :N]


def reference(x, wq, bias, scale_factor, zero_point):
    w = (wq.astype(jnp.float32) - zero_point) * scale_factor
    return x @ w.T + bias[None, :]


def _check(batch, in_features, out_features, key, scale_factor=0.05, zero_point=128, bits=8):
    kx, kw, kb = jax.random.split(key, 3)
    x = jax.random.normal(kx, (batch, in_features), dtype=jnp.float32)
    w_orig = jax.random.normal(kw, (out_features, in_features), dtype=jnp.float32) * 0.1
    bias = jax.random.normal(kb, (out_features,), dtype=jnp.float32) * 0.1
    wq = _quantize_weight(w_orig, bits, scale_factor, zero_point)

    prepared = prepare_quantized_linear(wq, bias)                   # one-time prep
    out = quantized_linear(x, prepared, scale_factor, zero_point)
    out = jax.block_until_ready(out)
    ref = reference(x, wq, bias, scale_factor, zero_point)
    assert out.shape == (batch, out_features)
    assert jnp.allclose(out, ref, atol=2e-3, rtol=2e-3), (
        f"mismatch vs reference (max abs err "
        f"{float(jnp.max(jnp.abs(out - ref))):.3e})")


if __name__ == "__main__":
    key = jax.random.PRNGKey(0)
    k1, k2, k3 = jax.random.split(key, 3)

    # Toy shape matching the module hyperparameters (single-tile grid; N padded -> 128 lanes).
    _check(batch=8, in_features=32, out_features=32, key=k1)
    # Ragged shape exercising multi-step K accumulation + padding on every dim.
    _check(batch=20, in_features=1030, out_features=200, key=k2)
    # Multi-tile grid on all three axes (M, N, K each span >1 tile).
    _check(batch=160, in_features=1536, out_features=640, key=k3)

    print("KERNEL_OK")
</pallas_src>

<mosaic_0001>
module attributes {stable_mosaic.version = 11 : i64} {
  func.func @_quant_linear_kernel(%arg0: i32, %arg1: i32, %arg2: i32, %arg3: memref<1xf32, #tpu.memory_space<smem>>, %arg4: memref<8x128xbf16, #tpu.memory_space<vmem>>, %arg5: memref<8x128xbf16, #tpu.memory_space<vmem>>, %arg6: memref<128x128xi8, #tpu.memory_space<vmem>>, %arg7: memref<8x1xf32, #tpu.memory_space<vmem>>, %arg8: memref<1x128xf32, #tpu.memory_space<vmem>>, %arg9: memref<8x128xf32, #tpu.memory_space<vmem>>) attributes {dimension_semantics = [#tpu.dimension_semantics<parallel>, #tpu.dimension_semantics<parallel>, #tpu.dimension_semantics<arbitrary>], iteration_bounds = array<i64: 1, 1, 1>, scalar_prefetch = 0 : i64, scratch_operands = 0 : i64, tpu.core_type = #tpu.core_type<tc>, window_params = [{transform_indices = @transform_0, window_bounds = array<i64: 1>}, {transform_indices = @transform_1, window_bounds = array<i64: 8, 128>}, {transform_indices = @transform_2, window_bounds = array<i64: 8, 128>}, {transform_indices = @transform_3, window_bounds = array<i64: 128, 128>}, {transform_indices = @transform_4, window_bounds = array<i64: 8, 1>}, {transform_indices = @transform_5, window_bounds = array<i64: 1, 128>}, {transform_indices = @transform_6, window_bounds = array<i64: 8, 128>}]} {
    %c0_i32 = arith.constant 0 : i32
    %0 = arith.cmpi eq, %arg2, %c0_i32 : i32
    %1 = arith.extui %0 : i1 to i32
    %c0_i32_0 = arith.constant 0 : i32
    %2 = arith.cmpi ne, %1, %c0_i32_0 : i32
    scf.if %2 {
      %cst_13 = arith.constant 0.000000e+00 : f32
      %16 = vector.broadcast %cst_13 : f32 to vector<8x128xf32>
      %c0_14 = arith.constant 0 : index
      %c0_15 = arith.constant 0 : index
      %17 = vector.load %arg9[%c0_14, %c0_15] : memref<8x128xf32, #tpu.memory_space<vmem>>, vector<8x128xf32>
      tpu.vector_store %arg9[%c0_14, %c0_15], %16 {strides = array<i32>} : memref<8x128xf32, #tpu.memory_space<vmem>>, vector<8x128xf32>,
    } else {
    }
    %c0 = arith.constant 0 : index
    %c0_1 = arith.constant 0 : index
    %3 = vector.load %arg6[%c0, %c0_1] : memref<128x128xi8, #tpu.memory_space<vmem>>, vector<128x128xi8>
    %4 = arith.uitofp %3 : vector<128x128xi8> to vector<128x128xbf16>
    %c0_2 = arith.constant 0 : index
    %c0_3 = arith.constant 0 : index
    %5 = vector.load %arg9[%c0_2, %c0_3] : memref<8x128xf32, #tpu.memory_space<vmem>>, vector<8x128xf32>
    %c0_4 = arith.constant 0 : index
    %c0_5 = arith.constant 0 : index
    %6 = vector.load %arg4[%c0_4, %c0_5] : memref<8x128xbf16, #tpu.memory_space<vmem>>, vector<8x128xbf16>
    %cst = arith.constant dense<0.000000e+00> : vector<8x128xf32>
    %7 = tpu.matmul %6, %4, %cst {dimension_numbers = #tpu.dot_dimension_numbers<[1], [0], [0], [1], [0, 0, 1, 1], [], []>} : vector<8x128xbf16>, vector<128x128xbf16>, vector<8x128xf32> -> vector<8x128xf32>
    %c0_6 = arith.constant 0 : index
    %c0_7 = arith.constant 0 : index
    %8 = vector.load %arg5[%c0_6, %c0_7] : memref<8x128xbf16, #tpu.memory_space<vmem>>, vector<8x128xbf16>
    %cst_8 = arith.constant dense<0.000000e+00> : vector<8x128xf32>
    %9 = tpu.matmul %8, %4, %cst_8 {dimension_numbers = #tpu.dot_dimension_numbers<[1], [0], [0], [1], [0, 0, 1, 1], [], []>} : vector<8x128xbf16>, vector<128x128xbf16>, vector<8x128xf32> -> vector<8x128xf32>
    %10 = arith.addf %7, %9 : vector<8x128xf32>
    %11 = arith.addf %5, %10 : vector<8x128xf32>
    %c0_9 = arith.constant 0 : index
    %c0_10 = arith.constant 0 : index
    %12 = vector.load %arg9[%c0_9, %c0_10] : memref<8x128xf32, #tpu.memory_space<vmem>>, vector<8x128xf32>
    tpu.vector_store %arg9[%c0_9, %c0_10], %11 {strides = array<i32>} : memref<8x128xf32, #tpu.memory_space<vmem>>, vector<8x128xf32>,
    %c0_i32_11 = arith.constant 0 : i32
    %13 = arith.cmpi eq, %arg2, %c0_i32_11 : i32
    %14 = arith.extui %13 : i1 to i32
    %c0_i32_12 = arith.constant 0 : i32
    %15 = arith.cmpi ne, %14, %c0_i32_12 : i32
    scf.if %15 {
      %c0_13 = arith.constant 0 : index
      %16 = memref.load %arg3[%c0_13] : memref<1xf32, #tpu.memory_space<smem>>
      %c0_14 = arith.constant 0 : index
      %c0_15 = arith.constant 0 : index
      %17 = vector.load %arg9[%c0_14, %c0_15] : memref<8x128xf32, #tpu.memory_space<vmem>>, vector<8x128xf32>
      %18 = vector.broadcast %16 : f32 to vector<8x128xf32>
      %19 = arith.mulf %18, %17 : vector<8x128xf32>
      %c0_16 = arith.constant 0 : index
      %c0_17 = arith.constant 0 : index
      %20 = vector.load %arg7[%c0_16, %c0_17] : memref<8x1xf32, #tpu.memory_space<vmem>>, vector<8x1xf32>
      %21 = vector.broadcast %20 : vector<8x1xf32> to vector<8x128xf32>
      %22 = arith.addf %19, %21 : vector<8x128xf32>
      %c0_18 = arith.constant 0 : index
      %c0_19 = arith.constant 0 : index
      %23 = vector.load %arg8[%c0_18, %c0_19] : memref<1x128xf32, #tpu.memory_space<vmem>>, vector<1x128xf32>
      %24 = vector.broadcast %23 : vector<1x128xf32> to vector<8x128xf32>
      %25 = arith.addf %22, %24 : vector<8x128xf32>
      %c0_20 = arith.constant 0 : index
      %c0_21 = arith.constant 0 : index
      %26 = vector.load %arg9[%c0_20, %c0_21] : memref<8x128xf32, #tpu.memory_space<vmem>>, vector<8x128xf32>
      tpu.vector_store %arg9[%c0_20, %c0_21], %25 {strides = array<i32>} : memref<8x128xf32, #tpu.memory_space<vmem>>, vector<8x128xf32>,
    } else {
    }
    return
  }
  func.func @transform_0(%arg0: i32, %arg1: i32, %arg2: i32) -> i32 {
    %c0_i32 = arith.constant 0 : i32
    %c0_i32_0 = arith.constant 0 : i32
    return %c0_i32 : i32
  }
  func.func @transform_1(%arg0: i32, %arg1: i32, %arg2: i32) -> (i32, i32) {
    %c0_i32 = arith.constant 0 : i32
    return %arg0, %arg2 : i32, i32
  }
  func.func @transform_2(%arg0: i32, %arg1: i32, %arg2: i32) -> (i32, i32) {
    %c0_i32 = arith.constant 0 : i32
    return %arg0, %arg2 : i32, i32
  }
  func.func @transform_3(%arg0: i32, %arg1: i32, %arg2: i32) -> (i32, i32) {
    %c0_i32 = arith.constant 0 : i32
    return %arg2, %arg1 : i32, i32
  }
  func.func @transform_4(%arg0: i32, %arg1: i32, %arg2: i32) -> (i32, i32) {
    %c0_i32 = arith.constant 0 : i32
    %c0_i32_0 = arith.constant 0 : i32
    return %arg0, %c0_i32 : i32, i32
  }
  func.func @transform_5(%arg0: i32, %arg1: i32, %arg2: i32) -> (i32, i32) {
    %c0_i32 = arith.constant 0 : i32
    %c0_i32_0 = arith.constant 0 : i32
    return %c0_i32, %arg1 : i32, i32
  }
  func.func @transform_6(%arg0: i32, %arg1: i32, %arg2: i32) -> (i32, i32) {
    %c0_i32 = arith.constant 0 : i32
    return %arg0, %arg1 : i32, i32
  }
}

</mosaic_0001>

<llo_original>
// kernel: tpu_custom_call.1
$region0: #{tpu_custom_call.1}
  #allocation0 [shape = 'u32[]', space=smem, size = 0x4, offset = 0x4, fixed_abs, tag = 'smem constant byte address 0x4 - core index']
  #allocation1 [shape = 'u32[144,128]{1,0:T(1,128)}', space=vmem, size = 0x12000, scoped, tag = 'internal scratch']
  #allocation2 [shape = 'f32[1]{0:T(128)S(6)}', space=smem, size = 0x200, scoped, tag = 'scoped memory for tpu_custom_call.1']
  %s0 = inlined_call_operand.<no memory space> [shape: f32[1], index: 0, kind: input, shape index: {}]
  %s1 = inlined_call_operand.vmem [shape: bf16[8,128], index: 1, kind: input, shape index: {}]
  %s2 = inlined_call_operand.vmem [shape: bf16[8,128], index: 2, kind: input, shape index: {}]
  %s3 = inlined_call_operand.hbm [shape: u8[128,128], index: 3, kind: input, shape index: {}]
  %s4 = inlined_call_operand.vmem [shape: f32[8,1], index: 4, kind: input, shape index: {}]
  %s5 = inlined_call_operand.vmem [shape: f32[1,128], index: 5, kind: input, shape index: {}]
  %s6 = inlined_call_operand.hbm [shape: f32[8,128], index: 6, kind: output, shape index: {}]
  %s7 = sld [smem:[#allocation0]]
  $region46: #{tpu_custom_call.1} parent=0
    _
  %s9 = ssub.s32 1, %s7
  %s10 = scalar_select 0, %s9, %s7
  %11 = sst [smem:[#allocation2]] %s0
  $region1: #{tpu_custom_call.1} parent=0
    #allocation3 [shape = 'u8[16384]{0}', space=vmem, size = 0x4000, scoped, tag = 'input window, operand 3, single buffered']
    #allocation4 [shape = 's32[1]{0}', space=sflag, size = 0x4, scoped, tag = 'scoped memory for tpu_custom_call.1']
    #allocation5 [shape = 's32[1]{0}', space=sflag, size = 0x4, scoped, tag = 'scoped memory for tpu_custom_call.1']
    #allocation6 [shape = 'u8[4096]{0}', space=vmem, size = 0x1000, scoped, tag = 'output window, operand 0, single buffered']
    %12 = vsyncpa [#allocation4], 0
    %13 = vsyncpa [#allocation5], 0
    // Predicated region
    $region2: #{tpu_custom_call.1} parent=1 // pred_check
      _
    $region3: #{tpu_custom_call.1} parent=1 // pred_check_branch
      %15 = sbr.rel (0) target = $region5
    $region4: #{tpu_custom_call.1} parent=1 // pred_region
      _
    $region5: #{tpu_custom_call.1} parent=1 // pred_fallthru
      _
    // Predicated region
    $region6: #{tpu_custom_call.1} parent=1 // pred_check
      _
    $region7: #{tpu_custom_call.1} parent=1 // pred_check_branch
      %17 = sbr.rel (0) target = $region9
    $region8: #{tpu_custom_call.1} parent=1 // pred_region
      _
    $region9: #{tpu_custom_call.1} parent=1 // pred_fallthru
      _
    // Predicated region
    $region10: #{tpu_custom_call.1} parent=1 // pred_check
      _
    $region11: #{tpu_custom_call.1} parent=1 // pred_check_branch
      %19 = sbr.rel (0) target = $region13
    $region12: #{tpu_custom_call.1} parent=1 // pred_region
      _
    $region13: #{tpu_custom_call.1} parent=1 // pred_fallthru
      _
    // Predicated region
    $region14: #{tpu_custom_call.1} parent=1 // pred_check
      _
    $region15: #{tpu_custom_call.1} parent=1 // pred_check_branch
      %21 = sbr.rel (0) target = $region17
    $region16: #{tpu_custom_call.1} parent=1 // pred_region
      %s23 = ssub.s32 512, 512
      %24 = vsyncadd [#allocation4], %s23
      %s25 = sshll.u32 [#allocation3], 4
      %s26 = int_to_ptr.vmem [resolvable:$true] %s25
      %31 = dma.hbm_to_vmem [thread:$0]  %s3, 512, %s26, [#allocation4], 128, 128, 8
    $region17: #{tpu_custom_call.1} parent=1 // pred_fallthru
      _
    // Predicated region
    $region18: #{tpu_custom_call.1} parent=1 // pred_check
      _
    $region19: #{tpu_custom_call.1} parent=1 // pred_check_branch
      %33 = sbr.rel (0) target = $region21
    $region20: #{tpu_custom_call.1} parent=1 // pred_region
      _
    $region21: #{tpu_custom_call.1} parent=1 // pred_fallthru
      _
    // Predicated region
    $region22: #{tpu_custom_call.1} parent=1 // pred_check
      _
    $region23: #{tpu_custom_call.1} parent=1 // pred_check_branch
      %35 = sbr.rel (0) target = $region25
    $region24: #{tpu_custom_call.1} parent=1 // pred_region
      _
    $region25: #{tpu_custom_call.1} parent=1 // pred_fallthru
      _
    // Predicated region
    $region26: #{tpu_custom_call.1} parent=1 // pred_check
      _
    $region27: #{tpu_custom_call.1} parent=1 // pred_check_branch
      %37 = sbr.rel (0) target = $region29
    $region28: #{tpu_custom_call.1} parent=1 // pred_region
      %38 = dma.done [#allocation4], 512
    $region29: #{tpu_custom_call.1} parent=1 // pred_fallthru
      _
    %p40 = scmp.eq.s32.totalorder 0, 0
    // Predicated region
    $region30: #{tpu_custom_call.1} parent=1 // pred_check
      %p41 = pneg %p40
    $region31: #{tpu_custom_call.1} parent=1 // pred_check_branch
      %43 = sbr.rel (%p41) target = $region33
    $region32: #{tpu_custom_call.1} parent=1 // pred_region
      %44 = vst [vmem:[#allocation6] sm:$0xff] 0.0
    $region33: #{tpu_custom_call.1} parent=1 // pred_fallthru
      _
    %v45 = vld [vmem:[#allocation3] sm:$0xff]
    %v46 = vld [vmem:[#allocation3 + $0x8] sm:$0xff]
    %v47 = vld [vmem:[#allocation3 + $0x10] sm:$0xff]
    %v48 = vld [vmem:[#allocation3 + $0x18] sm:$0xff]
    %v49 = vunpack.c.l.u8.bf16 %v45
    %v50 = vunpack.c.h.u8.bf16 %v45
    %v51 = vunpack.c.l.u8.bf16 %v46
    %v52 = vunpack.c.h.u8.bf16 %v46
    %v53 = vunpack.c.l.u8.bf16 %v47
    %v54 = vunpack.c.h.u8.bf16 %v47
    %v55 = vunpack.c.l.u8.bf16 %v48
    %v56 = vunpack.c.h.u8.bf16 %v48
    %v57 = vld [vmem:[#allocation6] sm:$0xff]
    %v58 = vld [vmem:[%s1] sm:$0xf]
    %v59 = vld [vmem:[%s2] sm:$0xf]
    %60 = vmatprep.subr.bf16.mxu0 0
    %61 = vmatpush1.bf16.msra.mxu0 %v49
    %62 = vmatprep.subr.bf16.mxu0 0
    %63 = vmatpush1.bf16.msra.mxu0 %v50
    %64 = vmatprep.subr.bf16.mxu0 0
    %65 = vmatpush1.bf16.msra.mxu0 %v51
    %66 = vmatprep.subr.bf16.mxu0 0
    %67 = vmatpush1.bf16.msra.mxu0 %v52
    %68 = vmatprep.subr.bf16.mxu0 0
    %69 = vmatpush1.bf16.msra.mxu0 %v53
    %70 = vmatprep.subr.bf16.mxu0 0
    %71 = vmatpush1.bf16.msra.mxu0 %v54
    %72 = vmatprep.subr.bf16.mxu0 0
    %73 = vmatpush1.bf16.msra.mxu0 %v55
    %74 = vmatprep.subr.bf16.mxu0 0
    %75 = vmatpush1.bf16.msra.mxu0 %v56
    %76 = vmatprep.subr.bf16.mxu0 0
    %77 = vmatpush1.bf16.msra.mxu0 0
    %78 = vmatprep.subr.bf16.mxu0 0
    %79 = vmatpush1.bf16.msra.mxu0 0
    %80 = vmatprep.subr.bf16.mxu0 0
    %81 = vmatpush1.bf16.msra.mxu0 0
    %82 = vmatprep.subr.bf16.mxu0 0
    %83 = vmatpush1.bf16.msra.mxu0 0
    %84 = vmatprep.subr.bf16.mxu0 0
    %85 = vmatpush1.bf16.msra.mxu0 0
    %86 = vmatprep.subr.bf16.mxu0 0
    %87 = vmatpush1.bf16.msra.mxu0 0
    %88 = vmatprep.subr.bf16.mxu0 0
    %89 = vmatpush1.bf16.msra.mxu0 0
    %90 = vmatprep.subr.bf16.mxu0 0
    %91 = vmatpush1.bf16.msra.mxu0 0
    %92 = vmatprep.mubr.bf16.mxu0 0
    %93 = vmatmul.mubr.bf16.gmra.mrb[0].mxu0 %v59
    %v94 = vpop.f32.mrb[0].mxu0
    %v95 = vadd.f32 0.0, %v94
    %v96 = vpop.f32.mrb[0].mxu0
    %v97 = vpop.f32.mrb[0].mxu0
    %v98 = vpop.f32.mrb[0].mxu0
    %99 = vdwg.mxu0
    %100 = vmatprep.subr.bf16.mxu0 0
    %101 = vmatpush1.bf16.msra.mxu0 %v49
    %102 = vmatprep.subr.bf16.mxu0 0
    %103 = vmatpush1.bf16.msra.mxu0 %v50
    %104 = vmatprep.subr.bf16.mxu0 0
    %105 = vmatpush1.bf16.msra.mxu0 %v51
    %106 = vmatprep.subr.bf16.mxu0 0
    %107 = vmatpush1.bf16.msra.mxu0 %v52
    %108 = vmatprep.subr.bf16.mxu0 0
    %109 = vmatpush1.bf16.msra.mxu0 %v53
    %110 = vmatprep.subr.bf16.mxu0 0
    %111 = vmatpush1.bf16.msra.mxu0 %v54
    %112 = vmatprep.subr.bf16.mxu0 0
    %113 = vmatpush1.bf16.msra.mxu0 %v55
    %114 = vmatprep.subr.bf16.mxu0 0
    %115 = vmatpush1.bf16.msra.mxu0 %v56
    %116 = vmatprep.subr.bf16.mxu0 0
    %117 = vmatpush1.bf16.msra.mxu0 0
    %118 = vmatprep.subr.bf16.mxu0 0
    %119 = vmatpush1.bf16.msra.mxu0 0
    %120 = vmatprep.subr.bf16.mxu0 0
    %121 = vmatpush1.bf16.msra.mxu0 0
    %122 = vmatprep.subr.bf16.mxu0 0
    %123 = vmatpush1.bf16.msra.mxu0 0
    %124 = vmatprep.subr.bf16.mxu0 0
    %125 = vmatpush1.bf16.msra.mxu0 0
    %126 = vmatprep.subr.bf16.mxu0 0
    %127 = vmatpush1.bf16.msra.mxu0 0
    %128 = vmatprep.subr.bf16.mxu0 0
    %129 = vmatpush1.bf16.msra.mxu0 0
    %130 = vmatprep.subr.bf16.mxu0 0
    %131 = vmatpush1.bf16.msra.mxu0 0
    %132 = vmatprep.mubr.bf16.mxu0 0
    %133 = vmatmul.mubr.bf16.gmra.mrb[0].mxu0 %v58
    %v134 = vpop.f32.mrb[0].mxu0
    %v135 = vadd.f32 %v95, %v134
    %v136 = vpop.f32.mrb[0].mxu0
    %v137 = vpop.f32.mrb[0].mxu0
    %v138 = vpop.f32.mrb[0].mxu0
    %139 = vdwg.mxu0
    %v140 = vadd.f32 %v57, %v135
    %141 = vst [vmem:[#allocation6] sm:$0xff] %v140
    // Predicated region
    $region34: #{tpu_custom_call.1} parent=1 // pred_check
      %p142 = pneg %p40
    $region35: #{tpu_custom_call.1} parent=1 // pred_check_branch
      %144 = sbr.rel (%p142) target = $region37
    $region36: #{tpu_custom_call.1} parent=1 // pred_region
      %s145 = sld [smem:[#allocation2]]
      %v146 = vld [vmem:[#allocation6] sm:$0xff]
      %v147 = vstv %s145
      %v148 = vmul.f32 %v147, %v146
      %v149 = vld [vmem:[%s4] sm:$0xff]
      %151 = vset.pattern.permute.xlu0 0
      %152 = vperm.xlu0 %151, %v149
      %v153 = vpop.permute.xlu0 %152
      %v155 = vadd.f32 %v148, %v153
      %v156 = vld [vmem:[%s5] sm:$0x1]
      %v158 = vlaneseq
      %v159 = vshrl.u32 %v158, 7
      %v160 = vsub.s32 0, %v159
      %v161 = vrot.slane %v156, %v160
      %v163 = vadd.f32 %v155, %v161
      %164 = vst [vmem:[#allocation6] sm:$0xff] %v163
    $region37: #{tpu_custom_call.1} parent=1 // pred_fallthru
      _
    // Predicated region
    $region38: #{tpu_custom_call.1} parent=1 // pred_check
      _
    $region39: #{tpu_custom_call.1} parent=1 // pred_check_branch
      %166 = sbr.rel (0) target = $region41
    $region40: #{tpu_custom_call.1} parent=1 // pred_region
      %s168 = ssub.s32 128, 128
      %169 = vsyncadd [#allocation5], %s168
      %s171 = sshll.u32 [#allocation6], 4
      %s172 = int_to_ptr.vmem [resolvable:$true] %s171
      %174 = dma.vmem_to_hbm [thread:$0]  %s172, 128, %s6, [#allocation5]
    $region41: #{tpu_custom_call.1} parent=1 // pred_fallthru
      _
    // Predicated region
    $region42: #{tpu_custom_call.1} parent=1 // pred_check
      _
    $region43: #{tpu_custom_call.1} parent=1 // pred_check_branch
      %176 = sbr.rel (0) target = $region45
    $region44: #{tpu_custom_call.1} parent=1 // pred_region
      %177 = dma.done [#allocation5], 128
    $region45: #{tpu_custom_call.1} parent=1 // pred_fallthru
      _
    %178 = vsyncpa [#allocation4], 1
    %179 = vsyncpa [#allocation5], 1

</llo_original>
